<compile_context>
chip_gen: v7x
topology: tpu7x:2x2x1
jax: 0.10.0
libtpu: 0.0.40
codegen_flags: <defaults>
</compile_context>

<pallas_src>
import jax
import jax.numpy as jnp
from jax.experimental import pallas as pl
from jax.experimental.pallas import tpu as pltpu


def alista_kernel(gt_ref, y_ref, w_ref, g_ref, x_ref, cs_ref):
    """All k ALISTA iterations in one invocation; x lives in vregs.

    gt_ref : (2, k) SMEM   row 0 = gamma, row 1 = theta
    y_ref  : (B, m) VMEM   measurements, batch-major (as given by caller)
    w_ref  : (m, n) VMEM   W (used once: yW = y @ W)
    g_ref  : (n, n) VMEM   G = phi^T @ W (fused dictionary product)
    x_ref  : (B, n) VMEM output  (== x.T of the torch module)
    cs_ref : (B, k) VMEM output  (per-step L1 norms of c)
    """
    B, n = x_ref.shape
    k = cs_ref.shape[1]

    # One-time per-call work: yW = y @ W  -> (B, n)
    yw = jnp.dot(y_ref[...], w_ref[...], preferred_element_type=jnp.float32)
    g = g_ref[...]                                                    # (n, n)

    x = jnp.zeros((B, n), jnp.float32)
    cs = jnp.zeros((B, k), jnp.float32)
    lane = jax.lax.broadcasted_iota(jnp.int32, (1, k), 1)             # (1, k)

    # k is static -> fully unrolled serial recurrence (concrete indices =>
    # static SMEM scalar reads; the step-i L1 reduce is off the x-dependence
    # chain and hides under step i+1's matmul).
    for i in range(k):
        if i == 0:
            c = -yw                                   # x == 0 exactly at step 0
        else:
            c = jnp.dot(x, g, preferred_element_type=jnp.float32) - yw  # (B, n)
        gamma = gt_ref[0, i]
        theta = gt_ref[1, i]
        z = x - gamma * c
        # soft threshold: sign(z)*relu(|z|-theta) == z - clip(z,-theta,theta)
        x = z - jnp.clip(z, -theta, theta)
        l1 = jnp.sum(jnp.abs(c), axis=1, keepdims=True)               # (B, 1)
        cs = cs + l1 * (lane == i).astype(jnp.float32)

    x_ref[...] = x
    cs_ref[...] = cs


def alista_forward(y, phi, W, gamma, theta, *, include_cs=False):
    """y: (batch, m) as in PyTorch.  phi, W: (m, n).  gamma, theta: (k,)."""
    f32 = jnp.float32
    y = jnp.asarray(y, f32)
    B, m = y.shape
    n = phi.shape[1]
    k = int(gamma.shape[0])

    W = jnp.asarray(W, f32)                              # (m, n)
    # One-time static-parameter prep (setup cost, not per-step / per-call data):
    #   c = (x @ phi^T - y) @ W  =  x @ (phi^T @ W) - y @ W
    G = jnp.asarray(phi, f32).T @ W                      # (n, n)
    gt = jnp.stack([jnp.asarray(gamma, f32),
                    jnp.asarray(theta, f32)], axis=0)    # (2, k) -> SMEM

    flops = 2 * B * m * n + 2 * B * n * n * (k - 1)      # yW + (k-1) fused steps
    bytes_accessed = 4 * (2 * k + B * m + m * n + n * n + B * n + B * k)

    x_out, cs = pl.pallas_call(
        alista_kernel,
        out_shape=(jax.ShapeDtypeStruct((B, n), f32),
                   jax.ShapeDtypeStruct((B, k), f32)),
        in_specs=[
            pl.BlockSpec(memory_space=pltpu.MemorySpace.SMEM),   # gamma/theta
            pl.BlockSpec(memory_space=pltpu.MemorySpace.VMEM),   # y
            pl.BlockSpec(memory_space=pltpu.MemorySpace.VMEM),   # W
            pl.BlockSpec(memory_space=pltpu.MemorySpace.VMEM),   # G
        ],
        out_specs=(
            pl.BlockSpec(memory_space=pltpu.MemorySpace.VMEM),   # x
            pl.BlockSpec(memory_space=pltpu.MemorySpace.VMEM),   # cs
        ),
        cost_estimate=pl.CostEstimate(flops=flops, transcendentals=0,
                                      bytes_accessed=bytes_accessed),
    )(gt, y, W, G)

    zeros = jnp.zeros((k, 1), f32)                       # matches torch.zeros(k, 1)
    if include_cs:
        return x_out, zeros, zeros, cs
    return x_out, zeros, zeros


def _reference(y, phi, W, gamma, theta):
    """Pure-JAX reference mirroring the PyTorch module exactly (two-step form)."""
    k = gamma.shape[0]
    B = y.shape[0]
    n = phi.shape[1]
    x = jnp.zeros((n, B), jnp.float32)
    cs = []
    for i in range(k):
        a = phi @ x
        b = a - y.T
        c = W.T @ b
        z = x - gamma[i] * c
        x = jnp.sign(z) * jnp.maximum(jnp.abs(z) - theta[i], 0.0)
        cs.append(jnp.sum(jnp.abs(c), axis=0).reshape(-1, 1))
    return x.T, jnp.concatenate(cs, axis=1)


if __name__ == "__main__":
    key = jax.random.PRNGKey(0)
    ks = jax.random.split(key, 5)

    B, M, N, K = 8, 64, 128, 8          # batch, measurements, signal dim, iters
    y = jax.random.normal(ks[0], (B, M), jnp.float32)
    phi = jax.random.normal(ks[1], (M, N), jnp.float32) / jnp.sqrt(M)
    W = jax.random.normal(ks[2], (M, N), jnp.float32) / jnp.sqrt(M)
    gamma = 0.05 + 0.10 * jax.random.uniform(ks[3], (K,), jnp.float32)
    theta = 0.01 + 0.05 * jax.random.uniform(ks[4], (K,), jnp.float32)
    # TODO(synk): `p` is accepted by soft_threshold in the PyTorch code but
    # never used, and `info`/`s`/`mu` do not affect the forward math; they are
    # intentionally omitted from the kernel interface.

    x_out, z1, z2, cs = alista_forward(y, phi, W, gamma, theta, include_cs=True)
    jax.block_until_ready((x_out, z1, z2, cs))

    ref_x, ref_cs = _reference(y, phi, W, gamma, theta)
    assert x_out.shape == (B, N) and cs.shape == (B, K)
    assert z1.shape == (K, 1) and z2.shape == (K, 1)
    assert jnp.allclose(x_out, ref_x, rtol=1e-3, atol=1e-3)
    assert jnp.allclose(cs, ref_cs, rtol=1e-3, atol=1e-3)

    print("KERNEL_OK")
</pallas_src>

<mosaic_0001>
module attributes {stable_mosaic.version = 11 : i64} {
  func.func @alista_kernel(%arg0: memref<2x8xf32, #tpu.memory_space<smem>>, %arg1: memref<8x64xf32, #tpu.memory_space<vmem>>, %arg2: memref<64x128xf32, #tpu.memory_space<vmem>>, %arg3: memref<128x128xf32, #tpu.memory_space<vmem>>, %arg4: memref<8x128xf32, #tpu.memory_space<vmem>>, %arg5: memref<8x8xf32, #tpu.memory_space<vmem>>) attributes {dimension_semantics = [], scalar_prefetch = 0 : i64, scratch_operands = 0 : i64, tpu.core_type = #tpu.core_type<tc>} {
    %c0 = arith.constant 0 : index
    %c0_0 = arith.constant 0 : index
    %0 = vector.load %arg1[%c0, %c0_0] : memref<8x64xf32, #tpu.memory_space<vmem>>, vector<8x64xf32>
    %c0_1 = arith.constant 0 : index
    %c0_2 = arith.constant 0 : index
    %1 = vector.load %arg2[%c0_1, %c0_2] : memref<64x128xf32, #tpu.memory_space<vmem>>, vector<64x128xf32>
    %cst = arith.constant dense<0.000000e+00> : vector<8x128xf32>
    %2 = tpu.matmul %0, %1, %cst {dimension_numbers = #tpu.dot_dimension_numbers<[1], [0], [0], [1], [0, 0, 1, 1], [], []>} : vector<8x64xf32>, vector<64x128xf32>, vector<8x128xf32> -> vector<8x128xf32>
    %c0_3 = arith.constant 0 : index
    %c0_4 = arith.constant 0 : index
    %3 = vector.load %arg3[%c0_3, %c0_4] : memref<128x128xf32, #tpu.memory_space<vmem>>, vector<128x128xf32>
    %cst_5 = arith.constant 0.000000e+00 : f32
    %4 = vector.broadcast %cst_5 : f32 to vector<8x128xf32>
    %cst_6 = arith.constant 0.000000e+00 : f32
    %5 = vector.broadcast %cst_6 : f32 to vector<8x8xf32>
    %6 = tpu.iota {dimensions = array<i32: 1>} : vector<1x8xi32>
    %cst_7 = arith.constant 0.000000e+00 : f32
    %7 = vector.broadcast %cst_7 : f32 to vector<8x128xf32>
    %8 = arith.subf %7, %2 : vector<8x128xf32>
    %c0_8 = arith.constant 0 : index
    %c0_9 = arith.constant 0 : index
    %9 = memref.load %arg0[%c0_8, %c0_9] : memref<2x8xf32, #tpu.memory_space<smem>>
    %c1 = arith.constant 1 : index
    %c0_10 = arith.constant 0 : index
    %10 = memref.load %arg0[%c1, %c0_10] : memref<2x8xf32, #tpu.memory_space<smem>>
    %11 = vector.broadcast %9 : f32 to vector<8x128xf32>
    %12 = arith.mulf %11, %8 : vector<8x128xf32>
    %13 = arith.subf %4, %12 : vector<8x128xf32>
    %cst_11 = arith.constant 0.000000e+00 : f32
    %14 = arith.subf %cst_11, %10 : f32
    %15 = vector.broadcast %14 : f32 to vector<8x128xf32>
    %16 = arith.maximumf %15, %13 : vector<8x128xf32>
    %17 = vector.broadcast %10 : f32 to vector<8x128xf32>
    %18 = arith.minimumf %17, %16 : vector<8x128xf32>
    %19 = arith.subf %13, %18 : vector<8x128xf32>
    %20 = math.absf %8 : vector<8x128xf32>
    %cst_12 = arith.constant dense<0.000000e+00> : vector<8xf32>
    %21 = vector.multi_reduction <add>, %20, %cst_12 [1] : vector<8x128xf32> to vector<8xf32>
    %22 = vector.shape_cast %21 : vector<8xf32> to vector<8x1xf32>
    %c0_i32 = arith.constant 0 : i32
    %23 = vector.broadcast %c0_i32 : i32 to vector<1x8xi32>
    %24 = arith.cmpi eq, %6, %23 : vector<1x8xi32>
    %25 = arith.extui %24 : vector<1x8xi1> to vector<1x8xi32>
    %26 = arith.sitofp %25 : vector<1x8xi32> to vector<1x8xf32>
    %27 = vector.broadcast %22 : vector<8x1xf32> to vector<8x8xf32>
    %28 = vector.broadcast %26 : vector<1x8xf32> to vector<8x8xf32>
    %29 = arith.mulf %27, %28 : vector<8x8xf32>
    %30 = arith.addf %5, %29 : vector<8x8xf32>
    %cst_13 = arith.constant dense<0.000000e+00> : vector<8x128xf32>
    %31 = tpu.matmul %19, %3, %cst_13 {dimension_numbers = #tpu.dot_dimension_numbers<[1], [0], [0], [1], [0, 0, 1, 1], [], []>} : vector<8x128xf32>, vector<128x128xf32>, vector<8x128xf32> -> vector<8x128xf32>
    %32 = arith.subf %31, %2 : vector<8x128xf32>
    %c0_14 = arith.constant 0 : index
    %c1_15 = arith.constant 1 : index
    %33 = memref.load %arg0[%c0_14, %c1_15] : memref<2x8xf32, #tpu.memory_space<smem>>
    %c1_16 = arith.constant 1 : index
    %c1_17 = arith.constant 1 : index
    %34 = memref.load %arg0[%c1_16, %c1_17] : memref<2x8xf32, #tpu.memory_space<smem>>
    %35 = vector.broadcast %33 : f32 to vector<8x128xf32>
    %36 = arith.mulf %35, %32 : vector<8x128xf32>
    %37 = arith.subf %19, %36 : vector<8x128xf32>
    %cst_18 = arith.constant 0.000000e+00 : f32
    %38 = arith.subf %cst_18, %34 : f32
    %39 = vector.broadcast %38 : f32 to vector<8x128xf32>
    %40 = arith.maximumf %39, %37 : vector<8x128xf32>
    %41 = vector.broadcast %34 : f32 to vector<8x128xf32>
    %42 = arith.minimumf %41, %40 : vector<8x128xf32>
    %43 = arith.subf %37, %42 : vector<8x128xf32>
    %44 = math.absf %32 : vector<8x128xf32>
    %cst_19 = arith.constant dense<0.000000e+00> : vector<8xf32>
    %45 = vector.multi_reduction <add>, %44, %cst_19 [1] : vector<8x128xf32> to vector<8xf32>
    %46 = vector.shape_cast %45 : vector<8xf32> to vector<8x1xf32>
    %c1_i32 = arith.constant 1 : i32
    %47 = vector.broadcast %c1_i32 : i32 to vector<1x8xi32>
    %48 = arith.cmpi eq, %6, %47 : vector<1x8xi32>
    %49 = arith.extui %48 : vector<1x8xi1> to vector<1x8xi32>
    %50 = arith.sitofp %49 : vector<1x8xi32> to vector<1x8xf32>
    %51 = vector.broadcast %46 : vector<8x1xf32> to vector<8x8xf32>
    %52 = vector.broadcast %50 : vector<1x8xf32> to vector<8x8xf32>
    %53 = arith.mulf %51, %52 : vector<8x8xf32>
    %54 = arith.addf %30, %53 : vector<8x8xf32>
    %cst_20 = arith.constant dense<0.000000e+00> : vector<8x128xf32>
    %55 = tpu.matmul %43, %3, %cst_20 {dimension_numbers = #tpu.dot_dimension_numbers<[1], [0], [0], [1], [0, 0, 1, 1], [], []>} : vector<8x128xf32>, vector<128x128xf32>, vector<8x128xf32> -> vector<8x128xf32>
    %56 = arith.subf %55, %2 : vector<8x128xf32>
    %c0_21 = arith.constant 0 : index
    %c2 = arith.constant 2 : index
    %57 = memref.load %arg0[%c0_21, %c2] : memref<2x8xf32, #tpu.memory_space<smem>>
    %c1_22 = arith.constant 1 : index
    %c2_23 = arith.constant 2 : index
    %58 = memref.load %arg0[%c1_22, %c2_23] : memref<2x8xf32, #tpu.memory_space<smem>>
    %59 = vector.broadcast %57 : f32 to vector<8x128xf32>
    %60 = arith.mulf %59, %56 : vector<8x128xf32>
    %61 = arith.subf %43, %60 : vector<8x128xf32>
    %cst_24 = arith.constant 0.000000e+00 : f32
    %62 = arith.subf %cst_24, %58 : f32
    %63 = vector.broadcast %62 : f32 to vector<8x128xf32>
    %64 = arith.maximumf %63, %61 : vector<8x128xf32>
    %65 = vector.broadcast %58 : f32 to vector<8x128xf32>
    %66 = arith.minimumf %65, %64 : vector<8x128xf32>
    %67 = arith.subf %61, %66 : vector<8x128xf32>
    %68 = math.absf %56 : vector<8x128xf32>
    %cst_25 = arith.constant dense<0.000000e+00> : vector<8xf32>
    %69 = vector.multi_reduction <add>, %68, %cst_25 [1] : vector<8x128xf32> to vector<8xf32>
    %70 = vector.shape_cast %69 : vector<8xf32> to vector<8x1xf32>
    %c2_i32 = arith.constant 2 : i32
    %71 = vector.broadcast %c2_i32 : i32 to vector<1x8xi32>
    %72 = arith.cmpi eq, %6, %71 : vector<1x8xi32>
    %73 = arith.extui %72 : vector<1x8xi1> to vector<1x8xi32>
    %74 = arith.sitofp %73 : vector<1x8xi32> to vector<1x8xf32>
    %75 = vector.broadcast %70 : vector<8x1xf32> to vector<8x8xf32>
    %76 = vector.broadcast %74 : vector<1x8xf32> to vector<8x8xf32>
    %77 = arith.mulf %75, %76 : vector<8x8xf32>
    %78 = arith.addf %54, %77 : vector<8x8xf32>
    %cst_26 = arith.constant dense<0.000000e+00> : vector<8x128xf32>
    %79 = tpu.matmul %67, %3, %cst_26 {dimension_numbers = #tpu.dot_dimension_numbers<[1], [0], [0], [1], [0, 0, 1, 1], [], []>} : vector<8x128xf32>, vector<128x128xf32>, vector<8x128xf32> -> vector<8x128xf32>
    %80 = arith.subf %79, %2 : vector<8x128xf32>
    %c0_27 = arith.constant 0 : index
    %c3 = arith.constant 3 : index
    %81 = memref.load %arg0[%c0_27, %c3] : memref<2x8xf32, #tpu.memory_space<smem>>
    %c1_28 = arith.constant 1 : index
    %c3_29 = arith.constant 3 : index
    %82 = memref.load %arg0[%c1_28, %c3_29] : memref<2x8xf32, #tpu.memory_space<smem>>
    %83 = vector.broadcast %81 : f32 to vector<8x128xf32>
    %84 = arith.mulf %83, %80 : vector<8x128xf32>
    %85 = arith.subf %67, %84 : vector<8x128xf32>
    %cst_30 = arith.constant 0.000000e+00 : f32
    %86 = arith.subf %cst_30, %82 : f32
    %87 = vector.broadcast %86 : f32 to vector<8x128xf32>
    %88 = arith.maximumf %87, %85 : vector<8x128xf32>
    %89 = vector.broadcast %82 : f32 to vector<8x128xf32>
    %90 = arith.minimumf %89, %88 : vector<8x128xf32>
    %91 = arith.subf %85, %90 : vector<8x128xf32>
    %92 = math.absf %80 : vector<8x128xf32>
    %cst_31 = arith.constant dense<0.000000e+00> : vector<8xf32>
    %93 = vector.multi_reduction <add>, %92, %cst_31 [1] : vector<8x128xf32> to vector<8xf32>
    %94 = vector.shape_cast %93 : vector<8xf32> to vector<8x1xf32>
    %c3_i32 = arith.constant 3 : i32
    %95 = vector.broadcast %c3_i32 : i32 to vector<1x8xi32>
    %96 = arith.cmpi eq, %6, %95 : vector<1x8xi32>
    %97 = arith.extui %96 : vector<1x8xi1> to vector<1x8xi32>
    %98 = arith.sitofp %97 : vector<1x8xi32> to vector<1x8xf32>
    %99 = vector.broadcast %94 : vector<8x1xf32> to vector<8x8xf32>
    %100 = vector.broadcast %98 : vector<1x8xf32> to vector<8x8xf32>
    %101 = arith.mulf %99, %100 : vector<8x8xf32>
    %102 = arith.addf %78, %101 : vector<8x8xf32>
    %cst_32 = arith.constant dense<0.000000e+00> : vector<8x128xf32>
    %103 = tpu.matmul %91, %3, %cst_32 {dimension_numbers = #tpu.dot_dimension_numbers<[1], [0], [0], [1], [0, 0, 1, 1], [], []>} : vector<8x128xf32>, vector<128x128xf32>, vector<8x128xf32> -> vector<8x128xf32>
    %104 = arith.subf %103, %2 : vector<8x128xf32>
    %c0_33 = arith.constant 0 : index
    %c4 = arith.constant 4 : index
    %105 = memref.load %arg0[%c0_33, %c4] : memref<2x8xf32, #tpu.memory_space<smem>>
    %c1_34 = arith.constant 1 : index
    %c4_35 = arith.constant 4 : index
    %106 = memref.load %arg0[%c1_34, %c4_35] : memref<2x8xf32, #tpu.memory_space<smem>>
    %107 = vector.broadcast %105 : f32 to vector<8x128xf32>
    %108 = arith.mulf %107, %104 : vector<8x128xf32>
    %109 = arith.subf %91, %108 : vector<8x128xf32>
    %cst_36 = arith.constant 0.000000e+00 : f32
    %110 = arith.subf %cst_36, %106 : f32
    %111 = vector.broadcast %110 : f32 to vector<8x128xf32>
    %112 = arith.maximumf %111, %109 : vector<8x128xf32>
    %113 = vector.broadcast %106 : f32 to vector<8x128xf32>
    %114 = arith.minimumf %113, %112 : vector<8x128xf32>
    %115 = arith.subf %109, %114 : vector<8x128xf32>
    %116 = math.absf %104 : vector<8x128xf32>
    %cst_37 = arith.constant dense<0.000000e+00> : vector<8xf32>
    %117 = vector.multi_reduction <add>, %116, %cst_37 [1] : vector<8x128xf32> to vector<8xf32>
    %118 = vector.shape_cast %117 : vector<8xf32> to vector<8x1xf32>
    %c4_i32 = arith.constant 4 : i32
    %119 = vector.broadcast %c4_i32 : i32 to vector<1x8xi32>
    %120 = arith.cmpi eq, %6, %119 : vector<1x8xi32>
    %121 = arith.extui %120 : vector<1x8xi1> to vector<1x8xi32>
    %122 = arith.sitofp %121 : vector<1x8xi32> to vector<1x8xf32>
    %123 = vector.broadcast %118 : vector<8x1xf32> to vector<8x8xf32>
    %124 = vector.broadcast %122 : vector<1x8xf32> to vector<8x8xf32>
    %125 = arith.mulf %123, %124 : vector<8x8xf32>
    %126 = arith.addf %102, %125 : vector<8x8xf32>
    %cst_38 = arith.constant dense<0.000000e+00> : vector<8x128xf32>
    %127 = tpu.matmul %115, %3, %cst_38 {dimension_numbers = #tpu.dot_dimension_numbers<[1], [0], [0], [1], [0, 0, 1, 1], [], []>} : vector<8x128xf32>, vector<128x128xf32>, vector<8x128xf32> -> vector<8x128xf32>
    %128 = arith.subf %127, %2 : vector<8x128xf32>
    %c0_39 = arith.constant 0 : index
    %c5 = arith.constant 5 : index
    %129 = memref.load %arg0[%c0_39, %c5] : memref<2x8xf32, #tpu.memory_space<smem>>
    %c1_40 = arith.constant 1 : index
    %c5_41 = arith.constant 5 : index
    %130 = memref.load %arg0[%c1_40, %c5_41] : memref<2x8xf32, #tpu.memory_space<smem>>
    %131 = vector.broadcast %129 : f32 to vector<8x128xf32>
    %132 = arith.mulf %131, %128 : vector<8x128xf32>
    %133 = arith.subf %115, %132 : vector<8x128xf32>
    %cst_42 = arith.constant 0.000000e+00 : f32
    %134 = arith.subf %cst_42, %130 : f32
    %135 = vector.broadcast %134 : f32 to vector<8x128xf32>
    %136 = arith.maximumf %135, %133 : vector<8x128xf32>
    %137 = vector.broadcast %130 : f32 to vector<8x128xf32>
    %138 = arith.minimumf %137, %136 : vector<8x128xf32>
    %139 = arith.subf %133, %138 : vector<8x128xf32>
    %140 = math.absf %128 : vector<8x128xf32>
    %cst_43 = arith.constant dense<0.000000e+00> : vector<8xf32>
    %141 = vector.multi_reduction <add>, %140, %cst_43 [1] : vector<8x128xf32> to vector<8xf32>
    %142 = vector.shape_cast %141 : vector<8xf32> to vector<8x1xf32>
    %c5_i32 = arith.constant 5 : i32
    %143 = vector.broadcast %c5_i32 : i32 to vector<1x8xi32>
    %144 = arith.cmpi eq, %6, %143 : vector<1x8xi32>
    %145 = arith.extui %144 : vector<1x8xi1> to vector<1x8xi32>
    %146 = arith.sitofp %145 : vector<1x8xi32> to vector<1x8xf32>
    %147 = vector.broadcast %142 : vector<8x1xf32> to vector<8x8xf32>
    %148 = vector.broadcast %146 : vector<1x8xf32> to vector<8x8xf32>
    %149 = arith.mulf %147, %148 : vector<8x8xf32>
    %150 = arith.addf %126, %149 : vector<8x8xf32>
    %cst_44 = arith.constant dense<0.000000e+00> : vector<8x128xf32>
    %151 = tpu.matmul %139, %3, %cst_44 {dimension_numbers = #tpu.dot_dimension_numbers<[1], [0], [0], [1], [0, 0, 1, 1], [], []>} : vector<8x128xf32>, vector<128x128xf32>, vector<8x128xf32> -> vector<8x128xf32>
    %152 = arith.subf %151, %2 : vector<8x128xf32>
    %c0_45 = arith.constant 0 : index
    %c6 = arith.constant 6 : index
    %153 = memref.load %arg0[%c0_45, %c6] : memref<2x8xf32, #tpu.memory_space<smem>>
    %c1_46 = arith.constant 1 : index
    %c6_47 = arith.constant 6 : index
    %154 = memref.load %arg0[%c1_46, %c6_47] : memref<2x8xf32, #tpu.memory_space<smem>>
    %155 = vector.broadcast %153 : f32 to vector<8x128xf32>
    %156 = arith.mulf %155, %152 : vector<8x128xf32>
    %157 = arith.subf %139, %156 : vector<8x128xf32>
    %cst_48 = arith.constant 0.000000e+00 : f32
    %158 = arith.subf %cst_48, %154 : f32
    %159 = vector.broadcast %158 : f32 to vector<8x128xf32>
    %160 = arith.maximumf %159, %157 : vector<8x128xf32>
    %161 = vector.broadcast %154 : f32 to vector<8x128xf32>
    %162 = arith.minimumf %161, %160 : vector<8x128xf32>
    %163 = arith.subf %157, %162 : vector<8x128xf32>
    %164 = math.absf %152 : vector<8x128xf32>
    %cst_49 = arith.constant dense<0.000000e+00> : vector<8xf32>
    %165 = vector.multi_reduction <add>, %164, %cst_49 [1] : vector<8x128xf32> to vector<8xf32>
    %166 = vector.shape_cast %165 : vector<8xf32> to vector<8x1xf32>
    %c6_i32 = arith.constant 6 : i32
    %167 = vector.broadcast %c6_i32 : i32 to vector<1x8xi32>
    %168 = arith.cmpi eq, %6, %167 : vector<1x8xi32>
    %169 = arith.extui %168 : vector<1x8xi1> to vector<1x8xi32>
    %170 = arith.sitofp %169 : vector<1x8xi32> to vector<1x8xf32>
    %171 = vector.broadcast %166 : vector<8x1xf32> to vector<8x8xf32>
    %172 = vector.broadcast %170 : vector<1x8xf32> to vector<8x8xf32>
    %173 = arith.mulf %171, %172 : vector<8x8xf32>
    %174 = arith.addf %150, %173 : vector<8x8xf32>
    %cst_50 = arith.constant dense<0.000000e+00> : vector<8x128xf32>
    %175 = tpu.matmul %163, %3, %cst_50 {dimension_numbers = #tpu.dot_dimension_numbers<[1], [0], [0], [1], [0, 0, 1, 1], [], []>} : vector<8x128xf32>, vector<128x128xf32>, vector<8x128xf32> -> vector<8x128xf32>
    %176 = arith.subf %175, %2 : vector<8x128xf32>
    %c0_51 = arith.constant 0 : index
    %c7 = arith.constant 7 : index
    %177 = memref.load %arg0[%c0_51, %c7] : memref<2x8xf32, #tpu.memory_space<smem>>
    %c1_52 = arith.constant 1 : index
    %c7_53 = arith.constant 7 : index
    %178 = memref.load %arg0[%c1_52, %c7_53] : memref<2x8xf32, #tpu.memory_space<smem>>
    %179 = vector.broadcast %177 : f32 to vector<8x128xf32>
    %180 = arith.mulf %179, %176 : vector<8x128xf32>
    %181 = arith.subf %163, %180 : vector<8x128xf32>
    %cst_54 = arith.constant 0.000000e+00 : f32
    %182 = arith.subf %cst_54, %178 : f32
    %183 = vector.broadcast %182 : f32 to vector<8x128xf32>
    %184 = arith.maximumf %183, %181 : vector<8x128xf32>
    %185 = vector.broadcast %178 : f32 to vector<8x128xf32>
    %186 = arith.minimumf %185, %184 : vector<8x128xf32>
    %187 = arith.subf %181, %186 : vector<8x128xf32>
    %188 = math.absf %176 : vector<8x128xf32>
    %cst_55 = arith.constant dense<0.000000e+00> : vector<8xf32>
    %189 = vector.multi_reduction <add>, %188, %cst_55 [1] : vector<8x128xf32> to vector<8xf32>
    %190 = vector.shape_cast %189 : vector<8xf32> to vector<8x1xf32>
    %c7_i32 = arith.constant 7 : i32
    %191 = vector.broadcast %c7_i32 : i32 to vector<1x8xi32>
    %192 = arith.cmpi eq, %6, %191 : vector<1x8xi32>
    %193 = arith.extui %192 : vector<1x8xi1> to vector<1x8xi32>
    %194 = arith.sitofp %193 : vector<1x8xi32> to vector<1x8xf32>
    %195 = vector.broadcast %190 : vector<8x1xf32> to vector<8x8xf32>
    %196 = vector.broadcast %194 : vector<1x8xf32> to vector<8x8xf32>
    %197 = arith.mulf %195, %196 : vector<8x8xf32>
    %198 = arith.addf %174, %197 : vector<8x8xf32>
    %c0_56 = arith.constant 0 : index
    %c0_57 = arith.constant 0 : index
    %199 = vector.load %arg4[%c0_56, %c0_57] : memref<8x128xf32, #tpu.memory_space<vmem>>, vector<8x128xf32>
    tpu.vector_store %arg4[%c0_56, %c0_57], %187 {strides = array<i32>} : memref<8x128xf32, #tpu.memory_space<vmem>>, vector<8x128xf32>,
    %c0_58 = arith.constant 0 : index
    %c0_59 = arith.constant 0 : index
    %200 = vector.load %arg5[%c0_58, %c0_59] : memref<8x8xf32, #tpu.memory_space<vmem>>, vector<8x8xf32>
    tpu.vector_store %arg5[%c0_58, %c0_59], %198 {strides = array<i32>} : memref<8x8xf32, #tpu.memory_space<vmem>>, vector<8x8xf32>,
    return
  }
}

</mosaic_0001>

<llo_original>
// kernel: tpu_custom_call.1
$region0: #{tpu_custom_call.1}
  #allocation0 [shape = 'u32[]', space=smem, size = 0x4, offset = 0x4, fixed_abs, tag = 'smem constant byte address 0x4 - core index']
  #allocation1 [shape = 'u32[144,128]{1,0:T(1,128)}', space=vmem, size = 0x12000, scoped, tag = 'internal scratch']
  %s0 = inlined_call_operand.hbm [shape: f32[2,8], index: 0, kind: input, shape index: {}]
  %s1 = inlined_call_operand.hbm [shape: f32[8,64], index: 1, kind: input, shape index: {}]
  %s2 = inlined_call_operand.hbm [shape: f32[64,128], index: 2, kind: input, shape index: {}]
  %s3 = inlined_call_operand.hbm [shape: f32[128,128], index: 3, kind: input, shape index: {}]
  %s4 = inlined_call_operand.hbm [shape: f32[8,128], index: 4, kind: output, shape index: {0}]
  %s5 = inlined_call_operand.hbm [shape: f32[8,8], index: 5, kind: output, shape index: {1}]
  %6 = xla_tuple %s4, %s5
  %s7 = sld [smem:[#allocation0]]
  $region50: #{tpu_custom_call.1} parent=0
    _
  %s9 = ssub.s32 1, %s7
  %s10 = scalar_select 0, %s9, %s7
  $region1: #{tpu_custom_call.1} parent=0
    #allocation2 [shape = 'u8[1024]{0}', space=smem, size = 0x400, scoped, tag = 'input window, operand 0, single buffered']
    #allocation3 [shape = 's32[1]{0}', space=sflag, size = 0x4, scoped, tag = 'scoped memory for tpu_custom_call.1']
    #allocation4 [shape = 's32[1]{0}', space=sflag, size = 0x4, scoped, tag = 'scoped memory for tpu_custom_call.1']
    #allocation5 [shape = 's32[1]{0}', space=sflag, size = 0x4, scoped, tag = 'scoped memory for tpu_custom_call.1']
    #allocation6 [shape = 'u8[4096]{0}', space=vmem, size = 0x1000, scoped, tag = 'input window, operand 1, single buffered']
    #allocation7 [shape = 'u8[32768]{0}', space=vmem, size = 0x8000, scoped, tag = 'input window, operand 2, single buffered']
    #allocation8 [shape = 's32[1]{0}', space=sflag, size = 0x4, scoped, tag = 'scoped memory for tpu_custom_call.1']
    #allocation9 [shape = 'u8[65536]{0}', space=vmem, size = 0x10000, scoped, tag = 'input window, operand 3, single buffered']
    #allocation10 [shape = 'u8[4096]{0}', space=vmem, size = 0x1000, scoped, tag = 'output window, operand 0, single buffered']
    #allocation11 [shape = 'u8[4096]{0}', space=vmem, size = 0x1000, scoped, tag = 'output window, operand 1, single buffered']
    #allocation12 [shape = 's32[1]{0}', space=sflag, size = 0x4, scoped, tag = 'scoped memory for tpu_custom_call.1']
    %11 = vsyncpa [#allocation5], 0
    %12 = vsyncpa [#allocation3], 0
    %13 = vsyncpa [#allocation8], 0
    %14 = vsyncpa [#allocation4], 0
    %15 = vsyncpa [#allocation12], 0
    // Predicated region
    $region2: #{tpu_custom_call.1} parent=1 // pred_check
      _
    $region3: #{tpu_custom_call.1} parent=1 // pred_check_branch
      %17 = sbr.rel (0) target = $region5
    $region4: #{tpu_custom_call.1} parent=1 // pred_region
      %s19 = ssub.s32 32, 32
      %20 = vsyncadd [#allocation5], %s19
      %23 = dma.hbm_to_smem %s0, 32, [#allocation2], [#allocation5]
    $region5: #{tpu_custom_call.1} parent=1 // pred_fallthru
      _
    // Predicated region
    $region6: #{tpu_custom_call.1} parent=1 // pred_check
      _
    $region7: #{tpu_custom_call.1} parent=1 // pred_check_branch
      %25 = sbr.rel (0) target = $region9
    $region8: #{tpu_custom_call.1} parent=1 // pred_region
      %s27 = ssub.s32 128, 128
      %28 = vsyncadd [#allocation3], %s27
      %s30 = sshll.u32 [#allocation6], 4
      %s31 = int_to_ptr.vmem [resolvable:$true] %s30
      %33 = dma.hbm_to_vmem [thread:$0]  %s1, 128, %s31, [#allocation3]
    $region9: #{tpu_custom_call.1} parent=1 // pred_fallthru
      _
    // Predicated region
    $region10: #{tpu_custom_call.1} parent=1 // pred_check
      _
    $region11: #{tpu_custom_call.1} parent=1 // pred_check_branch
      %35 = sbr.rel (0) target = $region13
    $region12: #{tpu_custom_call.1} parent=1 // pred_region
      %s37 = ssub.s32 1024, 1024
      %38 = vsyncadd [#allocation8], %s37
      %s39 = sshll.u32 [#allocation7], 4
      %s40 = int_to_ptr.vmem [resolvable:$true] %s39
      %45 = dma.hbm_to_vmem [thread:$0]  %s2, 1024, %s40, [#allocation8], 128, 128, 8
    $region13: #{tpu_custom_call.1} parent=1 // pred_fallthru
      _
    // Predicated region
    $region14: #{tpu_custom_call.1} parent=1 // pred_check
      _
    $region15: #{tpu_custom_call.1} parent=1 // pred_check_branch
      %47 = sbr.rel (0) target = $region17
    $region16: #{tpu_custom_call.1} parent=1 // pred_region
      %s49 = ssub.s32 2048, 2048
      %50 = vsyncadd [#allocation8], %s49
      %s51 = sshll.u32 [#allocation9], 4
      %s52 = int_to_ptr.vmem [resolvable:$true] %s51
      %57 = dma.hbm_to_vmem [thread:$0]  %s3, 2048, %s52, [#allocation8], 128, 128, 8
    $region17: #{tpu_custom_call.1} parent=1 // pred_fallthru
      _
    // Predicated region
    $region18: #{tpu_custom_call.1} parent=1 // pred_check
      _
    $region19: #{tpu_custom_call.1} parent=1 // pred_check_branch
      %59 = sbr.rel (0) target = $region21
    $region20: #{tpu_custom_call.1} parent=1 // pred_region
      %60 = dma.done [#allocation5], 32
    $region21: #{tpu_custom_call.1} parent=1 // pred_fallthru
      _
    // Predicated region
    $region22: #{tpu_custom_call.1} parent=1 // pred_check
      _
    $region23: #{tpu_custom_call.1} parent=1 // pred_check_branch
      %62 = sbr.rel (0) target = $region25
    $region24: #{tpu_custom_call.1} parent=1 // pred_region
      %63 = dma.done [#allocation3], 128
    $region25: #{tpu_custom_call.1} parent=1 // pred_fallthru
      _
    // Predicated region
    $region26: #{tpu_custom_call.1} parent=1 // pred_check
      _
    $region27: #{tpu_custom_call.1} parent=1 // pred_check_branch
      %65 = sbr.rel (0) target = $region29
    $region28: #{tpu_custom_call.1} parent=1 // pred_region
      %66 = dma.done [#allocation8], 1024
    $region29: #{tpu_custom_call.1} parent=1 // pred_fallthru
      _
    // Predicated region
    $region30: #{tpu_custom_call.1} parent=1 // pred_check
      _
    $region31: #{tpu_custom_call.1} parent=1 // pred_check_branch
      %68 = sbr.rel (0) target = $region33
    $region32: #{tpu_custom_call.1} parent=1 // pred_region
      %69 = dma.done [#allocation8], 2048
    $region33: #{tpu_custom_call.1} parent=1 // pred_fallthru
      _
    %70 = sfence
    %v71 = vld [vmem:[#allocation6] sm:$0xff]
    %v72 = vld [vmem:[#allocation7] sm:$0xff]
    %v73 = vld [vmem:[#allocation7 + $0x8] sm:$0xff]
    %v74 = vld [vmem:[#allocation7 + $0x10] sm:$0xff]
    %v75 = vld [vmem:[#allocation7 + $0x18] sm:$0xff]
    %v76 = vld [vmem:[#allocation7 + $0x20] sm:$0xff]
    %v77 = vld [vmem:[#allocation7 + $0x28] sm:$0xff]
    %v78 = vld [vmem:[#allocation7 + $0x30] sm:$0xff]
    %v79 = vld [vmem:[#allocation7 + $0x38] sm:$0xff]
    %vm80 = vcmask 523264
    %v82 = vsel %vm80, %v71, 0
    %84 = vmatprep.subr.mxu0 0.0
    %85 = vmatpush1.msra.mxu0 %v72
    %86 = vmatprep.subr.mxu0 0.0
    %87 = vmatpush1.msra.mxu0 %v73
    %88 = vmatprep.subr.mxu0 0.0
    %89 = vmatpush1.msra.mxu0 %v74
    %90 = vmatprep.subr.mxu0 0.0
    %91 = vmatpush1.msra.mxu0 %v75
    %92 = vmatprep.subr.mxu0 0.0
    %93 = vmatpush1.msra.mxu0 %v76
    %94 = vmatprep.subr.mxu0 0.0
    %95 = vmatpush1.msra.mxu0 %v77
    %96 = vmatprep.subr.mxu0 0.0
    %97 = vmatpush1.msra.mxu0 %v78
    %98 = vmatprep.subr.mxu0 0.0
    %99 = vmatpush1.msra.mxu0 %v79
    %100 = vmatprep.subr.mxu0 0.0
    %101 = vmatpush1.msra.mxu0 0.0
    %102 = vmatprep.subr.mxu0 0.0
    %103 = vmatpush1.msra.mxu0 0.0
    %104 = vmatprep.subr.mxu0 0.0
    %105 = vmatpush1.msra.mxu0 0.0
    %106 = vmatprep.subr.mxu0 0.0
    %107 = vmatpush1.msra.mxu0 0.0
    %108 = vmatprep.subr.mxu0 0.0
    %109 = vmatpush1.msra.mxu0 0.0
    %110 = vmatprep.subr.mxu0 0.0
    %111 = vmatpush1.msra.mxu0 0.0
    %112 = vmatprep.subr.mxu0 0.0
    %113 = vmatpush1.msra.mxu0 0.0
    %114 = vmatprep.subr.mxu0 0.0
    %115 = vmatpush1.msra.mxu0 0.0
    %116 = vmatprep.subr.mxu0 0.0
    %117 = vmatpush1.msra.mxu0 0.0
    %118 = vmatprep.subr.mxu0 0.0
    %119 = vmatpush1.msra.mxu0 0.0
    %120 = vmatprep.subr.mxu0 0.0
    %121 = vmatpush1.msra.mxu0 0.0
    %122 = vmatprep.subr.mxu0 0.0
    %123 = vmatpush1.msra.mxu0 0.0
    %124 = vmatprep.subr.mxu0 0.0
    %125 = vmatpush1.msra.mxu0 0.0
    %126 = vmatprep.subr.mxu0 0.0
    %127 = vmatpush1.msra.mxu0 0.0
    %128 = vmatprep.subr.mxu0 0.0
    %129 = vmatpush1.msra.mxu0 0.0
    %130 = vmatprep.subr.mxu0 0.0
    %131 = vmatpush1.msra.mxu0 0.0
    %132 = vmatprep.subr.mxu0 0.0
    %133 = vmatpush1.msra.mxu0 0.0
    %134 = vmatprep.subr.mxu0 0.0
    %135 = vmatpush1.msra.mxu0 0.0
    %136 = vmatprep.subr.mxu0 0.0
    %137 = vmatpush1.msra.mxu0 0.0
    %138 = vmatprep.subr.mxu0 0.0
    %139 = vmatpush1.msra.mxu0 0.0
    %140 = vmatprep.subr.mxu0 0.0
    %141 = vmatpush1.msra.mxu0 0.0
    %142 = vmatprep.subr.mxu0 0.0
    %143 = vmatpush1.msra.mxu0 0.0
    %144 = vmatprep.subr.mxu0 0.0
    %145 = vmatpush1.msra.mxu0 0.0
    %146 = vmatprep.subr.mxu0 0.0
    %147 = vmatpush1.msra.mxu0 0.0
    %148 = vmatprep.mubr.f32.mxu0 0.0
    %149 = vmatmul.mubr.f32.gmra.mrb[0].mxu0 %v82
    %v150 = vpop.f32.mrb[0].mxu0
    %v151 = vadd.f32 0.0, %v150
    %v152 = vpop.f32.mrb[0].mxu0
    %153 = vdwg.mxu0
    %v154 = vld [vmem:[#allocation9] sm:$0xff]
    %v155 = vld [vmem:[#allocation9 + $0x8] sm:$0xff]
    %v156 = vld [vmem:[#allocation9 + $0x10] sm:$0xff]
    %v157 = vld [vmem:[#allocation9 + $0x18] sm:$0xff]
    %v158 = vld [vmem:[#allocation9 + $0x20] sm:$0xff]
    %v159 = vld [vmem:[#allocation9 + $0x28] sm:$0xff]
    %v160 = vld [vmem:[#allocation9 + $0x30] sm:$0xff]
    %v161 = vld [vmem:[#allocation9 + $0x38] sm:$0xff]
    %v162 = vld [vmem:[#allocation9 + $0x40] sm:$0xff]
    %v163 = vld [vmem:[#allocation9 + $0x48] sm:$0xff]
    %v164 = vld [vmem:[#allocation9 + $0x50] sm:$0xff]
    %v165 = vld [vmem:[#allocation9 + $0x58] sm:$0xff]
    %v166 = vld [vmem:[#allocation9 + $0x60] sm:$0xff]
    %v167 = vld [vmem:[#allocation9 + $0x68] sm:$0xff]
    %v168 = vld [vmem:[#allocation9 + $0x70] sm:$0xff]
    %v169 = vld [vmem:[#allocation9 + $0x78] sm:$0xff]
    %v170 = vlaneseq
    %v171 = vand.u32 %v170, 127
    %v172 = vsub.f32 0.0, %v151
    %s173 = sld [smem:[#allocation2]]
    %s174 = sld [smem:[#allocation2 + $0x80]]
    %v175 = vstv %s173
    %v176 = vmul.f32 %v175, %v172
    %v177 = vsub.f32 0.0, %v176
    %s178 = ssub.f32 0.0, %s174
    %v179 = vstv %s178
    %v180 = vmax.f32 %v179, %v177
    %v181 = vstv %s174
    %v182 = vmin.f32 %v181, %v180
    %v183 = vsub.f32 %v177, %v182
    %v184 = vand.u32 2147483647, %v172
    %185 = vadd.xlane.f32.xlu0 %v184
    %v186 = vpop.xlane.xlu0 %185
    %vm187 = vcmp.eq.s32.totalorder %v171, 0
    %v188 = vsel %vm187, 1, 0
    %v189 = vcvt.s32.f32 %v188
    %v190 = vmul.f32 %v186, %v189
    %v191 = vadd.f32 %v190, 0.0
    %192 = vmatprep.subr.mxu0 0.0
    %193 = vmatpush1.msra.mxu0 %v154
    %194 = vmatprep.subr.mxu0 0.0
    %195 = vmatpush1.msra.mxu0 %v155
    %196 = vmatprep.subr.mxu0 0.0
    %197 = vmatpush1.msra.mxu0 %v156
    %198 = vmatprep.subr.mxu0 0.0
    %199 = vmatpush1.msra.mxu0 %v157
    %200 = vmatprep.subr.mxu0 0.0
    %201 = vmatpush1.msra.mxu0 %v158
    %202 = vmatprep.subr.mxu0 0.0
    %203 = vmatpush1.msra.mxu0 %v159
    %204 = vmatprep.subr.mxu0 0.0
    %205 = vmatpush1.msra.mxu0 %v160
    %206 = vmatprep.subr.mxu0 0.0
    %207 = vmatpush1.msra.mxu0 %v161
    %208 = vmatprep.subr.mxu0 0.0
    %209 = vmatpush1.msra.mxu0 %v162
    %210 = vmatprep.subr.mxu0 0.0
    %211 = vmatpush1.msra.mxu0 %v163
    %212 = vmatprep.subr.mxu0 0.0
    %213 = vmatpush1.msra.mxu0 %v164
    %214 = vmatprep.subr.mxu0 0.0
    %215 = vmatpush1.msra.mxu0 %v165
    %216 = vmatprep.subr.mxu0 0.0
    %217 = vmatpush1.msra.mxu0 %v166
    %218 = vmatprep.subr.mxu0 0.0
    %219 = vmatpush1.msra.mxu0 %v167
    %220 = vmatprep.subr.mxu0 0.0
    %221 = vmatpush1.msra.mxu0 %v168
    %222 = vmatprep.subr.mxu0 0.0
    %223 = vmatpush1.msra.mxu0 %v169
    %224 = vmatprep.subr.mxu0 0.0
    %225 = vmatpush1.msra.mxu0 0.0
    %226 = vmatprep.subr.mxu0 0.0
    %227 = vmatpush1.msra.mxu0 0.0
    %228 = vmatprep.subr.mxu0 0.0
    %229 = vmatpush1.msra.mxu0 0.0
    %230 = vmatprep.subr.mxu0 0.0
    %231 = vmatpush1.msra.mxu0 0.0
    %232 = vmatprep.subr.mxu0 0.0
    %233 = vmatpush1.msra.mxu0 0.0
    %234 = vmatprep.subr.mxu0 0.0
    %235 = vmatpush1.msra.mxu0 0.0
    %236 = vmatprep.subr.mxu0 0.0
    %237 = vmatpush1.msra.mxu0 0.0
    %238 = vmatprep.subr.mxu0 0.0
    %239 = vmatpush1.msra.mxu0 0.0
    %240 = vmatprep.subr.mxu0 0.0
    %241 = vmatpush1.msra.mxu0 0.0
    %242 = vmatprep.subr.mxu0 0.0
    %243 = vmatpush1.msra.mxu0 0.0
    %244 = vmatprep.subr.mxu0 0.0
    %245 = vmatpush1.msra.mxu0 0.0
    %246 = vmatprep.subr.mxu0 0.0
    %247 = vmatpush1.msra.mxu0 0.0
    %248 = vmatprep.subr.mxu0 0.0
    %249 = vmatpush1.msra.mxu0 0.0
    %250 = vmatprep.subr.mxu0 0.0
    %251 = vmatpush1.msra.mxu0 0.0
    %252 = vmatprep.subr.mxu0 0.0
    %253 = vmatpush1.msra.mxu0 0.0
    %254 = vmatprep.subr.mxu0 0.0
    %255 = vmatpush1.msra.mxu0 0.0
    %256 = vmatprep.mubr.f32.mxu0 0.0
    %257 = vmatmul.mubr.f32.gmra.mrb[0].mxu0 %v183
    %v258 = vpop.f32.mrb[0].mxu0
    %v259 = vadd.f32 0.0, %v258
    %v260 = vpop.f32.mrb[0].mxu0
    %261 = vdwg.mxu0
    %v262 = vsub.f32 %v259, %v151
    %s263 = sld [smem:[#allocation2 + $0x1]]
    %s264 = sld [smem:[#allocation2 + $0x81]]
    %v265 = vstv %s263
    %v266 = vmul.f32 %v265, %v262
    %v267 = vsub.f32 %v183, %v266
    %s268 = ssub.f32 0.0, %s264
    %v269 = vstv %s268
    %v270 = vmax.f32 %v269, %v267
    %v271 = vstv %s264
    %v272 = vmin.f32 %v271, %v270
    %v273 = vsub.f32 %v267, %v272
    %v274 = vand.u32 2147483647, %v262
    %275 = vadd.xlane.f32.xlu0 %v274
    %v276 = vpop.xlane.xlu0 %275
    %vm277 = vcmp.eq.s32.totalorder %v171, 1
    %v278 = vsel %vm277, 1, 0
    %v279 = vcvt.s32.f32 %v278
    %v280 = vmul.f32 %v276, %v279
    %v281 = vadd.f32 %v191, %v280
    %282 = vmatprep.subr.mxu0 0.0
    %283 = vmatpush1.msra.mxu0 %v154
    %284 = vmatprep.subr.mxu0 0.0
    %285 = vmatpush1.msra.mxu0 %v155
    %286 = vmatprep.subr.mxu0 0.0
    %287 = vmatpush1.msra.mxu0 %v156
    %288 = vmatprep.subr.mxu0 0.0
    %289 = vmatpush1.msra.mxu0 %v157
    %290 = vmatprep.subr.mxu0 0.0
    %291 = vmatpush1.msra.mxu0 %v158
    %292 = vmatprep.subr.mxu0 0.0
    %293 = vmatpush1.msra.mxu0 %v159
    %294 = vmatprep.subr.mxu0 0.0
    %295 = vmatpush1.msra.mxu0 %v160
    %296 = vmatprep.subr.mxu0 0.0
    %297 = vmatpush1.msra.mxu0 %v161
    %298 = vmatprep.subr.mxu0 0.0
    %299 = vmatpush1.msra.mxu0 %v162
    %300 = vmatprep.subr.mxu0 0.0
    %301 = vmatpush1.msra.mxu0 %v163
    %302 = vmatprep.subr.mxu0 0.0
    %303 = vmatpush1.msra.mxu0 %v164
    %304 = vmatprep.subr.mxu0 0.0
    %305 = vmatpush1.msra.mxu0 %v165
    %306 = vmatprep.subr.mxu0 0.0
    %307 = vmatpush1.msra.mxu0 %v166
    %308 = vmatprep.subr.mxu0 0.0
    %309 = vmatpush1.msra.mxu0 %v167
    %310 = vmatprep.subr.mxu0 0.0
    %311 = vmatpush1.msra.mxu0 %v168
    %312 = vmatprep.subr.mxu0 0.0
    %313 = vmatpush1.msra.mxu0 %v169
    %314 = vmatprep.subr.mxu0 0.0
    %315 = vmatpush1.msra.mxu0 0.0
    %316 = vmatprep.subr.mxu0 0.0
    %317 = vmatpush1.msra.mxu0 0.0
    %318 = vmatprep.subr.mxu0 0.0
    %319 = vmatpush1.msra.mxu0 0.0
    %320 = vmatprep.subr.mxu0 0.0
    %321 = vmatpush1.msra.mxu0 0.0
    %322 = vmatprep.subr.mxu0 0.0
    %323 = vmatpush1.msra.mxu0 0.0
    %324 = vmatprep.subr.mxu0 0.0
    %325 = vmatpush1.msra.mxu0 0.0
    %326 = vmatprep.subr.mxu0 0.0
    %327 = vmatpush1.msra.mxu0 0.0
    %328 = vmatprep.subr.mxu0 0.0
    %329 = vmatpush1.msra.mxu0 0.0
    %330 = vmatprep.subr.mxu0 0.0
    %331 = vmatpush1.msra.mxu0 0.0
    %332 = vmatprep.subr.mxu0 0.0
    %333 = vmatpush1.msra.mxu0 0.0
    %334 = vmatprep.subr.mxu0 0.0
    %335 = vmatpush1.msra.mxu0 0.0
    %336 = vmatprep.subr.mxu0 0.0
    %337 = vmatpush1.msra.mxu0 0.0
    %338 = vmatprep.subr.mxu0 0.0
    %339 = vmatpush1.msra.mxu0 0.0
    %340 = vmatprep.subr.mxu0 0.0
    %341 = vmatpush1.msra.mxu0 0.0
    %342 = vmatprep.subr.mxu0 0.0
    %343 = vmatpush1.msra.mxu0 0.0
    %344 = vmatprep.subr.mxu0 0.0
    %345 = vmatpush1.msra.mxu0 0.0
    %346 = vmatprep.mubr.f32.mxu0 0.0
    %347 = vmatmul.mubr.f32.gmra.mrb[0].mxu0 %v273
    %v348 = vpop.f32.mrb[0].mxu0
    %v349 = vadd.f32 0.0, %v348
    %v350 = vpop.f32.mrb[0].mxu0
    %351 = vdwg.mxu0
    %v352 = vsub.f32 %v349, %v151
    %s353 = sld [smem:[#allocation2 + $0x2]]
    %s354 = sld [smem:[#allocation2 + $0x82]]
    %v355 = vstv %s353
    %v356 = vmul.f32 %v355, %v352
    %v357 = vsub.f32 %v273, %v356
    %s358 = ssub.f32 0.0, %s354
    %v359 = vstv %s358
    %v360 = vmax.f32 %v359, %v357
    %v361 = vstv %s354
    %v362 = vmin.f32 %v361, %v360
    %v363 = vsub.f32 %v357, %v362
    %v364 = vand.u32 2147483647, %v352
    %365 = vadd.xlane.f32.xlu0 %v364
    %v366 = vpop.xlane.xlu0 %365
    %vm367 = vcmp.eq.s32.totalorder %v171, 2
    %v368 = vsel %vm367, 1, 0
    %v369 = vcvt.s32.f32 %v368
    %v370 = vmul.f32 %v366, %v369
    %v371 = vadd.f32 %v281, %v370
    %372 = vmatprep.subr.mxu0 0.0
    %373 = vmatpush1.msra.mxu0 %v154
    %374 = vmatprep.subr.mxu0 0.0
    %375 = vmatpush1.msra.mxu0 %v155
    %376 = vmatprep.subr.mxu0 0.0
    %377 = vmatpush1.msra.mxu0 %v156
    %378 = vmatprep.subr.mxu0 0.0
    %379 = vmatpush1.msra.mxu0 %v157
    %380 = vmatprep.subr.mxu0 0.0
    %381 = vmatpush1.msra.mxu0 %v158
    %382 = vmatprep.subr.mxu0 0.0
    %383 = vmatpush1.msra.mxu0 %v159
    %384 = vmatprep.subr.mxu0 0.0
    %385 = vmatpush1.msra.mxu0 %v160
    %386 = vmatprep.subr.mxu0 0.0
    %387 = vmatpush1.msra.mxu0 %v161
    %388 = vmatprep.subr.mxu0 0.0
    %389 = vmatpush1.msra.mxu0 %v162
    %390 = vmatprep.subr.mxu0 0.0
    %391 = vmatpush1.msra.mxu0 %v163
    %392 = vmatprep.subr.mxu0 0.0
    %393 = vmatpush1.msra.mxu0 %v164
    %394 = vmatprep.subr.mxu0 0.0
    %395 = vmatpush1.msra.mxu0 %v165
    %396 = vmatprep.subr.mxu0 0.0
    %397 = vmatpush1.msra.mxu0 %v166
    %398 = vmatprep.subr.mxu0 0.0
    %399 = vmatpush1.msra.mxu0 %v167
    %400 = vmatprep.subr.mxu0 0.0
    %401 = vmatpush1.msra.mxu0 %v168
    %402 = vmatprep.subr.mxu0 0.0
    %403 = vmatpush1.msra.mxu0 %v169
    %404 = vmatprep.subr.mxu0 0.0
    %405 = vmatpush1.msra.mxu0 0.0
    %406 = vmatprep.subr.mxu0 0.0
    %407 = vmatpush1.msra.mxu0 0.0
    %408 = vmatprep.subr.mxu0 0.0
    %409 = vmatpush1.msra.mxu0 0.0
    %410 = vmatprep.subr.mxu0 0.0
    %411 = vmatpush1.msra.mxu0 0.0
    %412 = vmatprep.subr.mxu0 0.0
    %413 = vmatpush1.msra.mxu0 0.0
    %414 = vmatprep.subr.mxu0 0.0
    %415 = vmatpush1.msra.mxu0 0.0
    %416 = vmatprep.subr.mxu0 0.0
    %417 = vmatpush1.msra.mxu0 0.0
    %418 = vmatprep.subr.mxu0 0.0
    %419 = vmatpush1.msra.mxu0 0.0
    %420 = vmatprep.subr.mxu0 0.0
    %421 = vmatpush1.msra.mxu0 0.0
    %422 = vmatprep.subr.mxu0 0.0
    %423 = vmatpush1.msra.mxu0 0.0
    %424 = vmatprep.subr.mxu0 0.0
    %425 = vmatpush1.msra.mxu0 0.0
    %426 = vmatprep.subr.mxu0 0.0
    %427 = vmatpush1.msra.mxu0 0.0
    %428 = vmatprep.subr.mxu0 0.0
    %429 = vmatpush1.msra.mxu0 0.0
    %430 = vmatprep.subr.mxu0 0.0
    %431 = vmatpush1.msra.mxu0 0.0
    %432 = vmatprep.subr.mxu0 0.0
    %433 = vmatpush1.msra.mxu0 0.0
    %434 = vmatprep.subr.mxu0 0.0
    %435 = vmatpush1.msra.mxu0 0.0
    %436 = vmatprep.mubr.f32.mxu0 0.0
    %437 = vmatmul.mubr.f32.gmra.mrb[0].mxu0 %v363
    %v438 = vpop.f32.mrb[0].mxu0
    %v439 = vadd.f32 0.0, %v438
    %v440 = vpop.f32.mrb[0].mxu0
    %441 = vdwg.mxu0
    %v442 = vsub.f32 %v439, %v151
    %s443 = sld [smem:[#allocation2 + $0x3]]
    %s444 = sld [smem:[#allocation2 + $0x83]]
    %v445 = vstv %s443
    %v446 = vmul.f32 %v445, %v442
    %v447 = vsub.f32 %v363, %v446
    %s448 = ssub.f32 0.0, %s444
    %v449 = vstv %s448
    %v450 = vmax.f32 %v449, %v447
    %v451 = vstv %s444
    %v452 = vmin.f32 %v451, %v450
    %v453 = vsub.f32 %v447, %v452
    %v454 = vand.u32 2147483647, %v442
    %455 = vadd.xlane.f32.xlu0 %v454
    %v456 = vpop.xlane.xlu0 %455
    %vm457 = vcmp.eq.s32.totalorder %v171, 3
    %v458 = vsel %vm457, 1, 0
    %v459 = vcvt.s32.f32 %v458
    %v460 = vmul.f32 %v456, %v459
    %v461 = vadd.f32 %v371, %v460
    %462 = vmatprep.subr.mxu0 0.0
    %463 = vmatpush1.msra.mxu0 %v154
    %464 = vmatprep.subr.mxu0 0.0
    %465 = vmatpush1.msra.mxu0 %v155
    %466 = vmatprep.subr.mxu0 0.0
    %467 = vmatpush1.msra.mxu0 %v156
    %468 = vmatprep.subr.mxu0 0.0
    %469 = vmatpush1.msra.mxu0 %v157
    %470 = vmatprep.subr.mxu0 0.0
    %471 = vmatpush1.msra.mxu0 %v158
    %472 = vmatprep.subr.mxu0 0.0
    %473 = vmatpush1.msra.mxu0 %v159
    %474 = vmatprep.subr.mxu0 0.0
    %475 = vmatpush1.msra.mxu0 %v160
    %476 = vmatprep.subr.mxu0 0.0
    %477 = vmatpush1.msra.mxu0 %v161
    %478 = vmatprep.subr.mxu0 0.0
    %479 = vmatpush1.msra.mxu0 %v162
    %480 = vmatprep.subr.mxu0 0.0
    %481 = vmatpush1.msra.mxu0 %v163
    %482 = vmatprep.subr.mxu0 0.0
    %483 = vmatpush1.msra.mxu0 %v164
    %484 = vmatprep.subr.mxu0 0.0
    %485 = vmatpush1.msra.mxu0 %v165
    %486 = vmatprep.subr.mxu0 0.0
    %487 = vmatpush1.msra.mxu0 %v166
    %488 = vmatprep.subr.mxu0 0.0
    %489 = vmatpush1.msra.mxu0 %v167
    %490 = vmatprep.subr.mxu0 0.0
    %491 = vmatpush1.msra.mxu0 %v168
    %492 = vmatprep.subr.mxu0 0.0
    %493 = vmatpush1.msra.mxu0 %v169
    %494 = vmatprep.subr.mxu0 0.0
    %495 = vmatpush1.msra.mxu0 0.0
    %496 = vmatprep.subr.mxu0 0.0
    %497 = vmatpush1.msra.mxu0 0.0
    %498 = vmatprep.subr.mxu0 0.0
    %499 = vmatpush1.msra.mxu0 0.0
    %500 = vmatprep.subr.mxu0 0.0
    %501 = vmatpush1.msra.mxu0 0.0
    %502 = vmatprep.subr.mxu0 0.0
    %503 = vmatpush1.msra.mxu0 0.0
    %504 = vmatprep.subr.mxu0 0.0
    %505 = vmatpush1.msra.mxu0 0.0
    %506 = vmatprep.subr.mxu0 0.0
    %507 = vmatpush1.msra.mxu0 0.0
    %508 = vmatprep.subr.mxu0 0.0
    %509 = vmatpush1.msra.mxu0 0.0
    %510 = vmatprep.subr.mxu0 0.0
    %511 = vmatpush1.msra.mxu0 0.0
    %512 = vmatprep.subr.mxu0 0.0
    %513 = vmatpush1.msra.mxu0 0.0
    %514 = vmatprep.subr.mxu0 0.0
    %515 = vmatpush1.msra.mxu0 0.0
    %516 = vmatprep.subr.mxu0 0.0
    %517 = vmatpush1.msra.mxu0 0.0
    %518 = vmatprep.subr.mxu0 0.0
    %519 = vmatpush1.msra.mxu0 0.0
    %520 = vmatprep.subr.mxu0 0.0
    %521 = vmatpush1.msra.mxu0 0.0
    %522 = vmatprep.subr.mxu0 0.0
    %523 = vmatpush1.msra.mxu0 0.0
    %524 = vmatprep.subr.mxu0 0.0
    %525 = vmatpush1.msra.mxu0 0.0
    %526 = vmatprep.mubr.f32.mxu0 0.0
    %527 = vmatmul.mubr.f32.gmra.mrb[0].mxu0 %v453
    %v528 = vpop.f32.mrb[0].mxu0
    %v529 = vadd.f32 0.0, %v528
    %v530 = vpop.f32.mrb[0].mxu0
    %531 = vdwg.mxu0
    %v532 = vsub.f32 %v529, %v151
    %s533 = sld [smem:[#allocation2 + $0x4]]
    %s534 = sld [smem:[#allocation2 + $0x84]]
    %v535 = vstv %s533
    %v536 = vmul.f32 %v535, %v532
    %v537 = vsub.f32 %v453, %v536
    %s538 = ssub.f32 0.0, %s534
    %v539 = vstv %s538
    %v540 = vmax.f32 %v539, %v537
    %v541 = vstv %s534
    %v542 = vmin.f32 %v541, %v540
    %v543 = vsub.f32 %v537, %v542
    %v544 = vand.u32 2147483647, %v532
    %545 = vadd.xlane.f32.xlu0 %v544
    %v546 = vpop.xlane.xlu0 %545
    %vm547 = vcmp.eq.s32.totalorder %v171, 4
    %v548 = vsel %vm547, 1, 0
    %v549 = vcvt.s32.f32 %v548
    %v550 = vmul.f32 %v546, %v549
    %v551 = vadd.f32 %v461, %v550
    %552 = vmatprep.subr.mxu0 0.0
    %553 = vmatpush1.msra.mxu0 %v154
    %554 = vmatprep.subr.mxu0 0.0
    %555 = vmatpush1.msra.mxu0 %v155
    %556 = vmatprep.subr.mxu0 0.0
    %557 = vmatpush1.msra.mxu0 %v156
    %558 = vmatprep.subr.mxu0 0.0
    %559 = vmatpush1.msra.mxu0 %v157
    %560 = vmatprep.subr.mxu0 0.0
    %561 = vmatpush1.msra.mxu0 %v158
    %562 = vmatprep.subr.mxu0 0.0
    %563 = vmatpush1.msra.mxu0 %v159
    %564 = vmatprep.subr.mxu0 0.0
    %565 = vmatpush1.msra.mxu0 %v160
    %566 = vmatprep.subr.mxu0 0.0
    %567 = vmatpush1.msra.mxu0 %v161
    %568 = vmatprep.subr.mxu0 0.0
    %569 = vmatpush1.msra.mxu0 %v162
    %570 = vmatprep.subr.mxu0 0.0
    %571 = vmatpush1.msra.mxu0 %v163
    %572 = vmatprep.subr.mxu0 0.0
    %573 = vmatpush1.msra.mxu0 %v164
    %574 = vmatprep.subr.mxu0 0.0
    %575 = vmatpush1.msra.mxu0 %v165
    %576 = vmatprep.subr.mxu0 0.0
    %577 = vmatpush1.msra.mxu0 %v166
    %578 = vmatprep.subr.mxu0 0.0
    %579 = vmatpush1.msra.mxu0 %v167
    %580 = vmatprep.subr.mxu0 0.0
    %581 = vmatpush1.msra.mxu0 %v168
    %582 = vmatprep.subr.mxu0 0.0
    %583 = vmatpush1.msra.mxu0 %v169
    %584 = vmatprep.subr.mxu0 0.0
    %585 = vmatpush1.msra.mxu0 0.0
    %586 = vmatprep.subr.mxu0 0.0
    %587 = vmatpush1.msra.mxu0 0.0
    %588 = vmatprep.subr.mxu0 0.0
    %589 = vmatpush1.msra.mxu0 0.0
    %590 = vmatprep.subr.mxu0 0.0
    %591 = vmatpush1.msra.mxu0 0.0
    %592 = vmatprep.subr.mxu0 0.0
    %593 = vmatpush1.msra.mxu0 0.0
    %594 = vmatprep.subr.mxu0 0.0
    %595 = vmatpush1.msra.mxu0 0.0
    %596 = vmatprep.subr.mxu0 0.0
    %597 = vmatpush1.msra.mxu0 0.0
    %598 = vmatprep.subr.mxu0 0.0
    %599 = vmatpush1.msra.mxu0 0.0
    %600 = vmatprep.subr.mxu0 0.0
    %601 = vmatpush1.msra.mxu0 0.0
    %602 = vmatprep.subr.mxu0 0.0
    %603 = vmatpush1.msra.mxu0 0.0
    %604 = vmatprep.subr.mxu0 0.0
    %605 = vmatpush1.msra.mxu0 0.0
    %606 = vmatprep.subr.mxu0 0.0
    %607 = vmatpush1.msra.mxu0 0.0
    %608 = vmatprep.subr.mxu0 0.0
    %609 = vmatpush1.msra.mxu0 0.0
    %610 = vmatprep.subr.mxu0 0.0
    %611 = vmatpush1.msra.mxu0 0.0
    %612 = vmatprep.subr.mxu0 0.0
    %613 = vmatpush1.msra.mxu0 0.0
    %614 = vmatprep.subr.mxu0 0.0
    %615 = vmatpush1.msra.mxu0 0.0
    %616 = vmatprep.mubr.f32.mxu0 0.0
    %617 = vmatmul.mubr.f32.gmra.mrb[0].mxu0 %v543
    %v618 = vpop.f32.mrb[0].mxu0
    %v619 = vadd.f32 0.0, %v618
    %v620 = vpop.f32.mrb[0].mxu0
    %621 = vdwg.mxu0
    %v622 = vsub.f32 %v619, %v151
    %s623 = sld [smem:[#allocation2 + $0x5]]
    %s624 = sld [smem:[#allocation2 + $0x85]]
    %v625 = vstv %s623
    %v626 = vmul.f32 %v625, %v622
    %v627 = vsub.f32 %v543, %v626
    %s628 = ssub.f32 0.0, %s624
    %v629 = vstv %s628
    %v630 = vmax.f32 %v629, %v627
    %v631 = vstv %s624
    %v632 = vmin.f32 %v631, %v630
    %v633 = vsub.f32 %v627, %v632
    %v634 = vand.u32 2147483647, %v622
    %635 = vadd.xlane.f32.xlu0 %v634
    %v636 = vpop.xlane.xlu0 %635
    %vm637 = vcmp.eq.s32.totalorder %v171, 5
    %v638 = vsel %vm637, 1, 0
    %v639 = vcvt.s32.f32 %v638
    %v640 = vmul.f32 %v636, %v639
    %v641 = vadd.f32 %v551, %v640
    %642 = vmatprep.subr.mxu0 0.0
    %643 = vmatpush1.msra.mxu0 %v154
    %644 = vmatprep.subr.mxu0 0.0
    %645 = vmatpush1.msra.mxu0 %v155
    %646 = vmatprep.subr.mxu0 0.0
    %647 = vmatpush1.msra.mxu0 %v156
    %648 = vmatprep.subr.mxu0 0.0
    %649 = vmatpush1.msra.mxu0 %v157
    %650 = vmatprep.subr.mxu0 0.0
    %651 = vmatpush1.msra.mxu0 %v158
    %652 = vmatprep.subr.mxu0 0.0
    %653 = vmatpush1.msra.mxu0 %v159
    %654 = vmatprep.subr.mxu0 0.0
    %655 = vmatpush1.msra.mxu0 %v160
    %656 = vmatprep.subr.mxu0 0.0
    %657 = vmatpush1.msra.mxu0 %v161
    %658 = vmatprep.subr.mxu0 0.0
    %659 = vmatpush1.msra.mxu0 %v162
    %660 = vmatprep.subr.mxu0 0.0
    %661 = vmatpush1.msra.mxu0 %v163
    %662 = vmatprep.subr.mxu0 0.0
    %663 = vmatpush1.msra.mxu0 %v164
    %664 = vmatprep.subr.mxu0 0.0
    %665 = vmatpush1.msra.mxu0 %v165
    %666 = vmatprep.subr.mxu0 0.0
    %667 = vmatpush1.msra.mxu0 %v166
    %668 = vmatprep.subr.mxu0 0.0
    %669 = vmatpush1.msra.mxu0 %v167
    %670 = vmatprep.subr.mxu0 0.0
    %671 = vmatpush1.msra.mxu0 %v168
    %672 = vmatprep.subr.mxu0 0.0
    %673 = vmatpush1.msra.mxu0 %v169
    %674 = vmatprep.subr.mxu0 0.0
    %675 = vmatpush1.msra.mxu0 0.0
    %676 = vmatprep.subr.mxu0 0.0
    %677 = vmatpush1.msra.mxu0 0.0
    %678 = vmatprep.subr.mxu0 0.0
    %679 = vmatpush1.msra.mxu0 0.0
    %680 = vmatprep.subr.mxu0 0.0
    %681 = vmatpush1.msra.mxu0 0.0
    %682 = vmatprep.subr.mxu0 0.0
    %683 = vmatpush1.msra.mxu0 0.0
    %684 = vmatprep.subr.mxu0 0.0
    %685 = vmatpush1.msra.mxu0 0.0
    %686 = vmatprep.subr.mxu0 0.0
    %687 = vmatpush1.msra.mxu0 0.0
    %688 = vmatprep.subr.mxu0 0.0
    %689 = vmatpush1.msra.mxu0 0.0
    %690 = vmatprep.subr.mxu0 0.0
    %691 = vmatpush1.msra.mxu0 0.0
    %692 = vmatprep.subr.mxu0 0.0
    %693 = vmatpush1.msra.mxu0 0.0
    %694 = vmatprep.subr.mxu0 0.0
    %695 = vmatpush1.msra.mxu0 0.0
    %696 = vmatprep.subr.mxu0 0.0
    %697 = vmatpush1.msra.mxu0 0.0
    %698 = vmatprep.subr.mxu0 0.0
    %699 = vmatpush1.msra.mxu0 0.0
    %700 = vmatprep.subr.mxu0 0.0
    %701 = vmatpush1.msra.mxu0 0.0
    %702 = vmatprep.subr.mxu0 0.0
    %703 = vmatpush1.msra.mxu0 0.0
    %704 = vmatprep.subr.mxu0 0.0
    %705 = vmatpush1.msra.mxu0 0.0
    %706 = vmatprep.mubr.f32.mxu0 0.0
    %707 = vmatmul.mubr.f32.gmra.mrb[0].mxu0 %v633
    %v708 = vpop.f32.mrb[0].mxu0
    %v709 = vadd.f32 0.0, %v708
    %v710 = vpop.f32.mrb[0].mxu0
    %711 = vdwg.mxu0
    %v712 = vsub.f32 %v709, %v151
    %s713 = sld [smem:[#allocation2 + $0x6]]
    %s714 = sld [smem:[#allocation2 + $0x86]]
    %v715 = vstv %s713
    %v716 = vmul.f32 %v715, %v712
    %v717 = vsub.f32 %v633, %v716
    %s718 = ssub.f32 0.0, %s714
    %v719 = vstv %s718
    %v720 = vmax.f32 %v719, %v717
    %v721 = vstv %s714
    %v722 = vmin.f32 %v721, %v720
    %v723 = vsub.f32 %v717, %v722
    %v724 = vand.u32 2147483647, %v712
    %725 = vadd.xlane.f32.xlu0 %v724
    %v726 = vpop.xlane.xlu0 %725
    %vm727 = vcmp.eq.s32.totalorder %v171, 6
    %v728 = vsel %vm727, 1, 0
    %v729 = vcvt.s32.f32 %v728
    %v730 = vmul.f32 %v726, %v729
    %v731 = vadd.f32 %v641, %v730
    %732 = vmatprep.subr.mxu0 0.0
    %733 = vmatpush1.msra.mxu0 %v154
    %734 = vmatprep.subr.mxu0 0.0
    %735 = vmatpush1.msra.mxu0 %v155
    %736 = vmatprep.subr.mxu0 0.0
    %737 = vmatpush1.msra.mxu0 %v156
    %738 = vmatprep.subr.mxu0 0.0
    %739 = vmatpush1.msra.mxu0 %v157
    %740 = vmatprep.subr.mxu0 0.0
    %741 = vmatpush1.msra.mxu0 %v158
    %742 = vmatprep.subr.mxu0 0.0
    %743 = vmatpush1.msra.mxu0 %v159
    %744 = vmatprep.subr.mxu0 0.0
    %745 = vmatpush1.msra.mxu0 %v160
    %746 = vmatprep.subr.mxu0 0.0
    %747 = vmatpush1.msra.mxu0 %v161
    %748 = vmatprep.subr.mxu0 0.0
    %749 = vmatpush1.msra.mxu0 %v162
    %750 = vmatprep.subr.mxu0 0.0
    %751 = vmatpush1.msra.mxu0 %v163
    %752 = vmatprep.subr.mxu0 0.0
    %753 = vmatpush1.msra.mxu0 %v164
    %754 = vmatprep.subr.mxu0 0.0
    %755 = vmatpush1.msra.mxu0 %v165
    %756 = vmatprep.subr.mxu0 0.0
    %757 = vmatpush1.msra.mxu0 %v166
    %758 = vmatprep.subr.mxu0 0.0
    %759 = vmatpush1.msra.mxu0 %v167
    %760 = vmatprep.subr.mxu0 0.0
    %761 = vmatpush1.msra.mxu0 %v168
    %762 = vmatprep.subr.mxu0 0.0
    %763 = vmatpush1.msra.mxu0 %v169
    %764 = vmatprep.subr.mxu0 0.0
    %765 = vmatpush1.msra.mxu0 0.0
    %766 = vmatprep.subr.mxu0 0.0
    %767 = vmatpush1.msra.mxu0 0.0
    %768 = vmatprep.subr.mxu0 0.0
    %769 = vmatpush1.msra.mxu0 0.0
    %770 = vmatprep.subr.mxu0 0.0
    %771 = vmatpush1.msra.mxu0 0.0
    %772 = vmatprep.subr.mxu0 0.0
    %773 = vmatpush1.msra.mxu0 0.0
    %774 = vmatprep.subr.mxu0 0.0
    %775 = vmatpush1.msra.mxu0 0.0
    %776 = vmatprep.subr.mxu0 0.0
    %777 = vmatpush1.msra.mxu0 0.0
    %778 = vmatprep.subr.mxu0 0.0
    %779 = vmatpush1.msra.mxu0 0.0
    %780 = vmatprep.subr.mxu0 0.0
    %781 = vmatpush1.msra.mxu0 0.0
    %782 = vmatprep.subr.mxu0 0.0
    %783 = vmatpush1.msra.mxu0 0.0
    %784 = vmatprep.subr.mxu0 0.0
    %785 = vmatpush1.msra.mxu0 0.0
    %786 = vmatprep.subr.mxu0 0.0
    %787 = vmatpush1.msra.mxu0 0.0
    %788 = vmatprep.subr.mxu0 0.0
    %789 = vmatpush1.msra.mxu0 0.0
    %790 = vmatprep.subr.mxu0 0.0
    %791 = vmatpush1.msra.mxu0 0.0
    %792 = vmatprep.subr.mxu0 0.0
    %793 = vmatpush1.msra.mxu0 0.0
    %794 = vmatprep.subr.mxu0 0.0
    %795 = vmatpush1.msra.mxu0 0.0
    %796 = vmatprep.mubr.f32.mxu0 0.0
    %797 = vmatmul.mubr.f32.gmra.mrb[0].mxu0 %v723
    %v798 = vpop.f32.mrb[0].mxu0
    %v799 = vadd.f32 0.0, %v798
    %v800 = vpop.f32.mrb[0].mxu0
    %801 = vdwg.mxu0
    %v802 = vsub.f32 %v799, %v151
    %s803 = sld [smem:[#allocation2 + $0x7]]
    %s804 = sld [smem:[#allocation2 + $0x87]]
    %v805 = vstv %s803
    %v806 = vmul.f32 %v805, %v802
    %v807 = vsub.f32 %v723, %v806
    %s808 = ssub.f32 0.0, %s804
    %v809 = vstv %s808
    %v810 = vmax.f32 %v809, %v807
    %v811 = vstv %s804
    %v812 = vmin.f32 %v811, %v810
    %v813 = vsub.f32 %v807, %v812
    %v814 = vand.u32 2147483647, %v802
    %815 = vadd.xlane.f32.xlu0 %v814
    %v816 = vpop.xlane.xlu0 %815
    %vm817 = vcmp.eq.s32.totalorder %v171, 7
    %v818 = vsel %vm817, 1, 0
    %v819 = vcvt.s32.f32 %v818
    %v820 = vmul.f32 %v816, %v819
    %v821 = vadd.f32 %v731, %v820
    %822 = vst [vmem:[#allocation10] sm:$0xff] %v813
    %vm823 = vcmask 64512
    %824 = vst.msk [vmem:[#allocation11] sm:$0xff] %vm823, %v821
    // Predicated region
    $region34: #{tpu_custom_call.1} parent=1 // pred_check
      _
    $region35: #{tpu_custom_call.1} parent=1 // pred_check_branch
      %826 = sbr.rel (0) target = $region37
    $region36: #{tpu_custom_call.1} parent=1 // pred_region
      %s828 = ssub.s32 128, 128
      %829 = vsyncadd [#allocation4], %s828
      %s831 = sshll.u32 [#allocation10], 4
      %s832 = int_to_ptr.vmem [resolvable:$true] %s831
      %834 = dma.vmem_to_hbm [thread:$0]  %s832, 128, %s4, [#allocation4]
    $region37: #{tpu_custom_call.1} parent=1 // pred_fallthru
      _
    // Predicated region
    $region38: #{tpu_custom_call.1} parent=1 // pred_check
      _
    $region39: #{tpu_custom_call.1} parent=1 // pred_check_branch
      %836 = sbr.rel (0) target = $region41
    $region40: #{tpu_custom_call.1} parent=1 // pred_region
      %s838 = ssub.s32 128, 128
      %839 = vsyncadd [#allocation12], %s838
      %s841 = sshll.u32 [#allocation11], 4
      %s842 = int_to_ptr.vmem [resolvable:$true] %s841
      %844 = dma.vmem_to_hbm [thread:$0]  %s842, 128, %s5, [#allocation12]
    $region41: #{tpu_custom_call.1} parent=1 // pred_fallthru
      _
    // Predicated region
    $region42: #{tpu_custom_call.1} parent=1 // pred_check
      _
    $region43: #{tpu_custom_call.1} parent=1 // pred_check_branch
      %846 = sbr.rel (0) target = $region45
    $region44: #{tpu_custom_call.1} parent=1 // pred_region
      %847 = dma.done [#allocation4], 128
    $region45: #{tpu_custom_call.1} parent=1 // pred_fallthru
      _
    // Predicated region
    $region46: #{tpu_custom_call.1} parent=1 // pred_check
      _
    $region47: #{tpu_custom_call.1} parent=1 // pred_check_branch
      %849 = sbr.rel (0) target = $region49
    $region48: #{tpu_custom_call.1} parent=1 // pred_region
      %850 = dma.done [#allocation12], 128
    $region49: #{tpu_custom_call.1} parent=1 // pred_fallthru
      _
    %851 = vsyncpa [#allocation3], 1
    %852 = vsyncpa [#allocation8], 1
    %853 = vsyncpa [#allocation4], 1
    %854 = vsyncpa [#allocation12], 1
    %855 = vsyncpa [#allocation5], 1

</llo_original>
